<compile_context>
chip_gen: v5e
topology: v5e:2x2
jax: 0.10.0
libtpu: 0.0.40
codegen_flags: <defaults>
</compile_context>

<pallas_src>
import jax
import jax.numpy as jnp
from jax.experimental import pallas as pl
from jax.experimental.pallas import tpu as pltpu

EPS = 1e-12  # F.normalize default eps (clamp_min on the norm)


# ----------------------------------------------------------------------------
# Kernels
# ----------------------------------------------------------------------------
def _proj_norm_kernel(x_ref, w_ref, b_ref, o_ref, acc_ref):
    """Single-pass path: full F_out row resident, norm in the k==last epilogue."""
    k = pl.program_id(1)

    @pl.when(k == 0)
    def _init():
        acc_ref[...] = jnp.zeros_like(acc_ref)

    # bf16 x bf16 -> f32 accumulation on the MXU.
    acc_ref[...] += jnp.dot(
        x_ref[...], w_ref[...], preferred_element_type=jnp.float32
    )

    @pl.when(k == pl.num_programs(1) - 1)
    def _finalize():
        y = acc_ref[...] + b_ref[...].astype(jnp.float32)   # bias added in f32
        sq = jnp.sum(y * y, axis=-1, keepdims=True)
        # F.normalize: y / max(||y||, eps)  ==  y * rsqrt(max(||y||^2, eps^2))
        inv = jax.lax.rsqrt(jnp.maximum(sq, EPS * EPS))
        o_ref[...] = (y * inv).astype(o_ref.dtype)


def _proj_tiled_kernel(x_ref, w_ref, b_ref, y_ref, ss_ref, acc_ref, ss_acc_ref):
    """F_out-tiled pass 1: unnormalized output tiles + per-row sum-of-squares."""
    n = pl.program_id(1)
    k = pl.program_id(2)

    @pl.when(jnp.logical_and(n == 0, k == 0))
    def _init_ss():
        ss_acc_ref[...] = jnp.zeros_like(ss_acc_ref)

    @pl.when(k == 0)
    def _init_acc():
        acc_ref[...] = jnp.zeros_like(acc_ref)

    acc_ref[...] += jnp.dot(
        x_ref[...], w_ref[...], preferred_element_type=jnp.float32
    )

    @pl.when(k == pl.num_programs(2) - 1)
    def _epilogue():
        y = acc_ref[...] + b_ref[...].astype(jnp.float32)
        ss_acc_ref[...] += jnp.sum(y * y, axis=-1, keepdims=True)
        y_ref[...] = y.astype(y_ref.dtype)

        @pl.when(n == pl.num_programs(1) - 1)
        def _write_ss():
            ss_ref[...] = ss_acc_ref[...]


def _scale_kernel(y_ref, ss_ref, o_ref):
    """F_out-tiled pass 2: cheap 1/norm scaling pass."""
    inv = jax.lax.rsqrt(jnp.maximum(ss_ref[...], EPS * EPS))
    o_ref[...] = (y_ref[...].astype(jnp.float32) * inv).astype(o_ref.dtype)


# ----------------------------------------------------------------------------
# Sizing helpers
# ----------------------------------------------------------------------------
def _round_up(v, m):
    return (v + m - 1) // m * m


def _round_down_to(v, m):
    return max(m, (v // m) * m)


def _vmem_budget():
    """Generation-aware VMEM sizing: (per-step tile budget, vmem_limit cap)."""
    try:
        cap = int(pltpu.get_tpu_info().vmem_capacity_bytes)
    except Exception:
        cap = 64 * 1024 * 1024  # conservative fallback (v7x-sized)
    # ~50% of physical for the per-step footprint; limit at 80% of physical so
    # v5e/v6e (128 MiB) get large tiles while v7x (64 MiB) keeps headroom.
    return cap // 2, int(cap * 0.8)


# ----------------------------------------------------------------------------
# Wrappers
# ----------------------------------------------------------------------------
def _single_pass(x_bf, w_bf, b_f32, B, K, F_out, tb, tk, out_dtype,
                 vmem_cap):
    out_isz = out_dtype.itemsize
    B_pad = _round_up(B, tb)
    K_pad = _round_up(K, tk)
    if B_pad != B or K_pad != K:
        x_bf = jnp.pad(x_bf, ((0, B_pad - B), (0, K_pad - K)))
    if K_pad != K:
        w_bf = jnp.pad(w_bf, ((0, K_pad - K), (0, 0)))

    grid = (B_pad // tb, K_pad // tk)
    n_btiles = grid[0]

    footprint = (2 * tb * tk * 2            # x tiles (bf16, double-buffered)
                 + 2 * tk * F_out * 2       # W tiles (bf16, double-buffered)
                 + 2 * F_out * 4            # bias tiles
                 + tb * F_out * 4           # f32 accumulator scratch
                 + 2 * tb * F_out * out_isz)  # output tiles
    vmem_limit = int(min(max(footprint + (8 << 20), 32 << 20), vmem_cap))

    cost = pl.CostEstimate(
        flops=2 * B_pad * K_pad * F_out,
        transcendentals=B_pad,                          # one rsqrt per row
        bytes_accessed=int(x_bf.size * 2                # x streamed once
                           + w_bf.size * 2 * n_btiles   # W re-streamed per batch tile
                           + F_out * 4
                           + B_pad * F_out * out_isz),
    )

    out = pl.pallas_call(
        _proj_norm_kernel,
        out_shape=jax.ShapeDtypeStruct((B_pad, F_out), out_dtype),
        grid_spec=pltpu.PrefetchScalarGridSpec(
            num_scalar_prefetch=0,
            grid=grid,
            in_specs=[
                pl.BlockSpec((tb, tk), lambda i, k: (i, k)),
                pl.BlockSpec((tk, F_out), lambda i, k: (k, 0)),
                pl.BlockSpec((1, F_out), lambda i, k: (0, 0)),
            ],
            out_specs=pl.BlockSpec((tb, F_out), lambda i, k: (i, 0)),
            scratch_shapes=[pltpu.VMEM((tb, F_out), jnp.float32)],
        ),
        compiler_params=pltpu.CompilerParams(
            dimension_semantics=("parallel", "arbitrary"),
            vmem_limit_bytes=vmem_limit,
        ),
        cost_estimate=cost,
    )(x_bf, w_bf, b_f32)
    return out[:B]


def _fout_tiled(x_bf, w_bf, b_f32, B, K, F_out, tb, tk, fout_tile, out_dtype,
                budget, vmem_cap):
    out_isz = out_dtype.itemsize
    tn = _round_down_to(fout_tile if fout_tile is not None else 2048, 128)
    tn = min(tn, _round_up(F_out, 128))

    def footprint(tb_, tk_, tn_):
        return (2 * tb_ * tk_ * 2          # x tiles
                + 2 * tk_ * tn_ * 2        # W tiles
                + 2 * tn_ * 4              # bias tiles
                + tb_ * tn_ * 4            # f32 acc scratch
                + tb_ * 4                  # sum-of-squares scratch
                + 2 * tb_ * tn_ * out_isz  # unnormalized y tiles
                + 2 * tb_ * 4)             # ss output tiles

    while footprint(tb, tk, tn) > budget and tn > 128:
        tn = _round_down_to(tn // 2, 128)
    while footprint(tb, tk, tn) > budget and tk > 128:
        tk = _round_down_to(tk // 2, 128)
    while footprint(tb, tk, tn) > budget and tb > 16:
        tb = _round_down_to(tb // 2, 16)

    B_pad = _round_up(B, tb)
    K_pad = _round_up(K, tk)
    N_pad = _round_up(F_out, tn)
    x_bf = jnp.pad(x_bf, ((0, B_pad - B), (0, K_pad - K)))
    w_bf = jnp.pad(w_bf, ((0, K_pad - K), (0, N_pad - F_out)))
    b_f32 = jnp.pad(b_f32, ((0, 0), (0, N_pad - F_out)))

    gb, gn, gk = B_pad // tb, N_pad // tn, K_pad // tk
    vmem_limit = int(min(max(footprint(tb, tk, tn) + (8 << 20), 32 << 20),
                         vmem_cap))

    cost1 = pl.CostEstimate(
        flops=2 * B_pad * K_pad * N_pad,
        transcendentals=0,
        bytes_accessed=int(x_bf.size * 2 * gn      # x re-streamed per F_out tile
                           + w_bf.size * 2 * gb    # W re-streamed per batch tile
                           + N_pad * 4
                           + B_pad * N_pad * out_isz
                           + B_pad * 4),
    )

    y, ss = pl.pallas_call(
        _proj_tiled_kernel,
        out_shape=(jax.ShapeDtypeStruct((B_pad, N_pad), out_dtype),
                   jax.ShapeDtypeStruct((B_pad, 1), jnp.float32)),
        grid_spec=pltpu.PrefetchScalarGridSpec(
            num_scalar_prefetch=0,
            grid=(gb, gn, gk),
            in_specs=[
                pl.BlockSpec((tb, tk), lambda i, n, k: (i, k)),
                pl.BlockSpec((tk, tn), lambda i, n, k: (k, n)),
                pl.BlockSpec((1, tn), lambda i, n, k: (0, n)),
            ],
            out_specs=[
                pl.BlockSpec((tb, tn), lambda i, n, k: (i, n)),
                pl.BlockSpec((tb, 1), lambda i, n, k: (i, 0)),
            ],
            scratch_shapes=[pltpu.VMEM((tb, tn), jnp.float32),
                            pltpu.VMEM((tb, 1), jnp.float32)],
        ),
        compiler_params=pltpu.CompilerParams(
            # TODO(synk): on v7x, splitting the F_out (n) axis across the two
            # TensorCores would halve per-chip W traffic for small-batch shapes;
            # the per-row sum-of-squares would then need a cross-core combine,
            # so the n axis stays "arbitrary" here.
            dimension_semantics=("parallel", "arbitrary", "arbitrary"),
            vmem_limit_bytes=vmem_limit,
        ),
        cost_estimate=cost1,
    )(x_bf, w_bf, b_f32)

    cost2 = pl.CostEstimate(
        flops=B_pad * N_pad,
        transcendentals=B_pad * gn,
        bytes_accessed=int(y.size * out_isz * 2 + B_pad * 4 * gn),
    )

    out = pl.pallas_call(
        _scale_kernel,
        out_shape=jax.ShapeDtypeStruct((B_pad, N_pad), out_dtype),
        grid_spec=pltpu.PrefetchScalarGridSpec(
            num_scalar_prefetch=0,
            grid=(gb, gn),
            in_specs=[
                pl.BlockSpec((tb, tn), lambda i, n: (i, n)),
                pl.BlockSpec((tb, 1), lambda i, n: (i, 0)),
            ],
            out_specs=pl.BlockSpec((tb, tn), lambda i, n: (i, n)),
        ),
        compiler_params=pltpu.CompilerParams(
            dimension_semantics=("parallel", "parallel"),
            vmem_limit_bytes=vmem_limit,
        ),
        cost_estimate=cost2,
    )(y, ss)
    return out[:B, :F_out]


def normalize_forward(x, w, b, *, tile_b=512, tile_k=512, fout_tile=None,
                      out_dtype=None):
    """Fused linear projector head + row-wise L2 normalization.

    x: [B, F_in]; w: [F_in, F_out] (ideally pre-cast to bf16); b: [F_out].
    Returns [B, F_out] with unit-L2 rows (dtype defaults to x.dtype).
    """
    B, K = x.shape
    Kw, F_out = w.shape
    assert Kw == K and b.shape == (F_out,)
    out_dtype = jnp.dtype(out_dtype or x.dtype)
    out_isz = out_dtype.itemsize

    budget, vmem_cap = _vmem_budget()

    # bf16 MXU operands (f32 accumulation inside the kernel).  Keep W pre-cast
    # in bf16 outside this call so the dominant stream is not re-materialized;
    # the casts here are skipped when dtypes already match.
    x_bf = x if x.dtype == jnp.bfloat16 else x.astype(jnp.bfloat16)
    w_bf = w if w.dtype == jnp.bfloat16 else w.astype(jnp.bfloat16)
    b_f32 = b.reshape(1, F_out).astype(jnp.float32)   # added in f32 epilogue

    # Hardware-aligned tiles: tb multiple of 16 (bf16 sublane packing),
    # tk multiple of 128 (lane dim of the x tiles).
    tb0 = min(_round_down_to(tile_b, 16), _round_up(B, 16))
    tk0 = min(_round_down_to(tile_k, 128), _round_up(K, 128))

    def sp_footprint(tb_, tk_):
        return (2 * tb_ * tk_ * 2
                + 2 * tk_ * F_out * 2
                + 2 * F_out * 4
                + tb_ * F_out * 4
                + 2 * tb_ * F_out * out_isz)

    tb, tk = tb0, tk0
    while sp_footprint(tb, tk) > budget and tk > 128:
        tk = _round_down_to(tk // 2, 128)
    while sp_footprint(tb, tk) > budget and tb > 16:
        tb = _round_down_to(tb // 2, 16)

    use_tiled = (fout_tile is not None) or sp_footprint(tb, tk) > budget
    if not use_tiled:
        return _single_pass(x_bf, w_bf, b_f32, B, K, F_out, tb, tk,
                            out_dtype, vmem_cap)
    return _fout_tiled(x_bf, w_bf, b_f32, B, K, F_out, tb0, tk0, fout_tile,
                       out_dtype, budget, vmem_cap)


if __name__ == "__main__":
    # TODO(synk): the wrapped `model` is arbitrary in the original module; the
    # backbone stays outside this kernel, which fuses its final linear projector
    # head with F.normalize(dim=-1).
    key = jax.random.PRNGKey(0)
    kx, kw, kb = jax.random.split(key, 3)

    B, F_IN, F_OUT = 48, 200, 256
    x = jax.random.normal(kx, (B, F_IN), dtype=jnp.float32)
    w = jax.random.normal(kw, (F_IN, F_OUT), dtype=jnp.float32) * 0.05
    b = jax.random.normal(kb, (F_OUT,), dtype=jnp.float32) * 0.01

    # Projector weights pre-cast to bf16 once (steady-state W stream is bf16).
    w_bf16 = w.astype(jnp.bfloat16)

    def reference(x_, w_, b_):
        y = x_ @ w_ + b_
        n = jnp.maximum(jnp.sqrt(jnp.sum(y * y, axis=-1, keepdims=True)), EPS)
        return y / n

    # bf16-operand reference (matches the kernel's MXU inputs, f32 bias).
    ref_bf = reference(x.astype(jnp.bfloat16).astype(jnp.float32),
                       w_bf16.astype(jnp.float32), b)
    # Full-precision reference.
    ref_f32 = reference(x, w, b)

    # Path 1: resident-F_out single-pass kernel.  Small tiles so the test
    # exercises both grid axes (3 batch tiles x 2 K tiles, incl. K padding).
    out = normalize_forward(x, w_bf16, b, tile_b=16, tile_k=128)
    jax.block_until_ready(out)
    assert out.shape == (B, F_OUT)
    assert jnp.allclose(out, ref_bf, atol=5e-3, rtol=5e-3), float(
        jnp.max(jnp.abs(out - ref_bf)))
    assert jnp.allclose(out, ref_f32, atol=2e-2, rtol=2e-2)
    assert jnp.allclose(jnp.linalg.norm(out, axis=-1), 1.0, atol=1e-3)

    # Path 2: F_out-tiled two-pass kernel (for very wide DINO prototype heads).
    out_t = normalize_forward(x, w_bf16, b, tile_b=16, tile_k=128,
                              fout_tile=128)
    jax.block_until_ready(out_t)
    assert out_t.shape == (B, F_OUT)
    assert jnp.allclose(out_t, ref_bf, atol=5e-3, rtol=5e-3), float(
        jnp.max(jnp.abs(out_t - ref_bf)))
    assert jnp.allclose(jnp.linalg.norm(out_t, axis=-1), 1.0, atol=1e-3)

    print("KERNEL_OK")
</pallas_src>

<mosaic_0001>
module attributes {stable_mosaic.version = 11 : i64} {
  func.func @_proj_norm_kernel(%arg0: i32, %arg1: i32, %arg2: memref<16x128xbf16, #tpu.memory_space<vmem>>, %arg3: memref<128x256xbf16, #tpu.memory_space<vmem>>, %arg4: memref<1x256xf32, #tpu.memory_space<vmem>>, %arg5: memref<16x256xf32, #tpu.memory_space<vmem>>, %arg6: memref<16x256xf32, #tpu.memory_space<vmem>>) attributes {dimension_semantics = [#tpu.dimension_semantics<parallel>, #tpu.dimension_semantics<arbitrary>], iteration_bounds = array<i64: 3, 2>, scalar_prefetch = 0 : i64, scratch_operands = 1 : i64, tpu.core_type = #tpu.core_type<tc>, window_params = [{transform_indices = @transform_0, window_bounds = array<i64: 16, 128>}, {transform_indices = @transform_1, window_bounds = array<i64: 128, 256>}, {pipeline_mode = #tpu.pipeline_mode<synchronous>, transform_indices = @transform_2, window_bounds = array<i64: 1, 256>}, {transform_indices = @transform_3, window_bounds = array<i64: 16, 256>}]} {
    %c0_i32 = arith.constant 0 : i32
    %0 = arith.cmpi eq, %arg1, %c0_i32 : i32
    %1 = arith.extui %0 : i1 to i32
    %c0_i32_0 = arith.constant 0 : i32
    %2 = arith.cmpi ne, %1, %c0_i32_0 : i32
    scf.if %2 {
      %cst_9 = arith.constant 0.000000e+00 : f32
      %12 = vector.broadcast %cst_9 : f32 to vector<16x256xf32>
      %c0_10 = arith.constant 0 : index
      %c0_11 = arith.constant 0 : index
      %13 = vector.load %arg6[%c0_10, %c0_11] : memref<16x256xf32, #tpu.memory_space<vmem>>, vector<16x256xf32>
      tpu.vector_store %arg6[%c0_10, %c0_11], %12 {strides = array<i32>} : memref<16x256xf32, #tpu.memory_space<vmem>>, vector<16x256xf32>,
    } else {
    }
    %c0 = arith.constant 0 : index
    %c0_1 = arith.constant 0 : index
    %3 = vector.load %arg6[%c0, %c0_1] : memref<16x256xf32, #tpu.memory_space<vmem>>, vector<16x256xf32>
    %c0_2 = arith.constant 0 : index
    %c0_3 = arith.constant 0 : index
    %4 = vector.load %arg2[%c0_2, %c0_3] : memref<16x128xbf16, #tpu.memory_space<vmem>>, vector<16x128xbf16>
    %c0_4 = arith.constant 0 : index
    %c0_5 = arith.constant 0 : index
    %5 = vector.load %arg3[%c0_4, %c0_5] : memref<128x256xbf16, #tpu.memory_space<vmem>>, vector<128x256xbf16>
    %cst = arith.constant dense<0.000000e+00> : vector<16x256xf32>
    %6 = tpu.matmul %4, %5, %cst {dimension_numbers = #tpu.dot_dimension_numbers<[1], [0], [0], [1], [0, 0, 1, 1], [], []>} : vector<16x128xbf16>, vector<128x256xbf16>, vector<16x256xf32> -> vector<16x256xf32>
    %7 = arith.addf %3, %6 : vector<16x256xf32>
    %c0_6 = arith.constant 0 : index
    %c0_7 = arith.constant 0 : index
    %8 = vector.load %arg6[%c0_6, %c0_7] : memref<16x256xf32, #tpu.memory_space<vmem>>, vector<16x256xf32>
    tpu.vector_store %arg6[%c0_6, %c0_7], %7 {strides = array<i32>} : memref<16x256xf32, #tpu.memory_space<vmem>>, vector<16x256xf32>,
    %c1_i32 = arith.constant 1 : i32
    %9 = arith.cmpi eq, %arg1, %c1_i32 : i32
    %10 = arith.extui %9 : i1 to i32
    %c0_i32_8 = arith.constant 0 : i32
    %11 = arith.cmpi ne, %10, %c0_i32_8 : i32
    scf.if %11 {
      %c0_9 = arith.constant 0 : index
      %c0_10 = arith.constant 0 : index
      %12 = vector.load %arg6[%c0_9, %c0_10] : memref<16x256xf32, #tpu.memory_space<vmem>>, vector<16x256xf32>
      %c0_11 = arith.constant 0 : index
      %c0_12 = arith.constant 0 : index
      %13 = vector.load %arg4[%c0_11, %c0_12] : memref<1x256xf32, #tpu.memory_space<vmem>>, vector<1x256xf32>
      %14 = vector.broadcast %13 : vector<1x256xf32> to vector<16x256xf32>
      %15 = arith.addf %12, %14 : vector<16x256xf32>
      %16 = arith.mulf %15, %15 : vector<16x256xf32>
      %cst_13 = arith.constant dense<0.000000e+00> : vector<16xf32>
      %17 = vector.multi_reduction <add>, %16, %cst_13 [1] : vector<16x256xf32> to vector<16xf32>
      %18 = vector.shape_cast %17 : vector<16xf32> to vector<16x1xf32>
      %cst_14 = arith.constant 1.000000e-24 : f32
      %19 = vector.broadcast %cst_14 : f32 to vector<16x1xf32>
      %20 = arith.maximumf %18, %19 : vector<16x1xf32>
      %21 = math.rsqrt %20 : vector<16x1xf32>
      %22 = vector.broadcast %21 : vector<16x1xf32> to vector<16x256xf32>
      %23 = arith.mulf %15, %22 : vector<16x256xf32>
      %c0_15 = arith.constant 0 : index
      %c0_16 = arith.constant 0 : index
      %24 = vector.load %arg5[%c0_15, %c0_16] : memref<16x256xf32, #tpu.memory_space<vmem>>, vector<16x256xf32>
      tpu.vector_store %arg5[%c0_15, %c0_16], %23 {strides = array<i32>} : memref<16x256xf32, #tpu.memory_space<vmem>>, vector<16x256xf32>,
    } else {
    }
    return
  }
  func.func @transform_0(%arg0: i32, %arg1: i32) -> (i32, i32) {
    %c0_i32 = arith.constant 0 : i32
    return %arg0, %arg1 : i32, i32
  }
  func.func @transform_1(%arg0: i32, %arg1: i32) -> (i32, i32) {
    %c0_i32 = arith.constant 0 : i32
    %c0_i32_0 = arith.constant 0 : i32
    return %arg1, %c0_i32 : i32, i32
  }
  func.func @transform_2(%arg0: i32, %arg1: i32) -> (i32, i32) {
    %c0_i32 = arith.constant 0 : i32
    %c0_i32_0 = arith.constant 0 : i32
    %c0_i32_1 = arith.constant 0 : i32
    return %c0_i32, %c0_i32_0 : i32, i32
  }
  func.func @transform_3(%arg0: i32, %arg1: i32) -> (i32, i32) {
    %c0_i32 = arith.constant 0 : i32
    %c0_i32_0 = arith.constant 0 : i32
    return %arg0, %c0_i32 : i32, i32
  }
}

</mosaic_0001>

<llo_original>
// kernel: tpu_custom_call.1
$region0: #{tpu_custom_call.1}
  #allocation0 [shape = 'u32[]', space=smem, size = 0x4, offset = 0x4, fixed_abs, tag = 'smem constant byte address 0x4 - core index']
  #allocation1 [shape = 'u32[72,128]{1,0:T(1,128)}', space=vmem, size = 0x9000, scoped, tag = 'internal scratch']
  #allocation2 [shape = 'f32[16,256]{1,0:T(8,128)}', space=vmem, size = 0x4000, scoped, tag = 'scratch operand']
  %s0 = inlined_call_operand.hbm [shape: bf16[48,256], index: 0, kind: input, shape index: {}]
  %s1 = inlined_call_operand.hbm [shape: bf16[256,256], index: 1, kind: input, shape index: {}]
  %s2 = inlined_call_operand.hbm [shape: f32[1,256], index: 2, kind: input, shape index: {}]
  %s3 = inlined_call_operand.hbm [shape: f32[48,256], index: 3, kind: output, shape index: {}]
  %s4 = sld [smem:[#allocation0]]
  $region65: #{tpu_custom_call.1} parent=0
    _
  %s6 = ssub.s32 1, %s4
  %s7 = scalar_select 0, %s6, %s4
  $region1: #{tpu_custom_call.1} parent=0
    #allocation3 [shape = 'u8[8192]{0}', space=vmem, size = 0x2000, scoped, tag = 'input window, operand 0']
    #allocation4 [shape = 's32[2]{0}', space=sflag, size = 0x8, scoped, tag = 'scoped memory for tpu_custom_call.1']
    #allocation5 [shape = 's32[2]{0}', space=sflag, size = 0x8, scoped, tag = 'scoped memory for tpu_custom_call.1']
    #allocation6 [shape = 'u8[131072]{0}', space=vmem, size = 0x20000, scoped, tag = 'input window, operand 1']
    #allocation7 [shape = 's32[2]{0}', space=sflag, size = 0x8, scoped, tag = 'scoped memory for tpu_custom_call.1']
    #allocation8 [shape = 'u8[1024]{0}', space=vmem, size = 0x400, scoped, tag = 'input window, operand 2, single buffered']
    #allocation9 [shape = 'u8[32768]{0}', space=vmem, size = 0x8000, scoped, tag = 'output window, operand 0']
    %8 = vsyncpa [#allocation4], 0
    %s9 = scalar_lea.sflag [#allocation4], 1
    %10 = vsyncpa %s9, 0
    %11 = vsyncpa [#allocation7], 0
    %s12 = scalar_lea.sflag [#allocation7], 1
    %13 = vsyncpa %s12, 0
    %14 = vsyncpa [#allocation5], 0
    %s15 = scalar_lea.sflag [#allocation5], 1
    %16 = vsyncpa %s15, 0
    loop: start=0, step=1, limit=8
    $region2: #{tpu_custom_call.1} parent=1 // loop_pre_header
      _
    $region3: #{tpu_custom_call.1} parent=1 // loop_header
      %s18 = sphi 0, %s22
      %p19 = scmp.ge.s32.totalorder %s18, 8
      %s25 = sphi 0, %s37
      %s26 = sphi 0, %s33
      %s27 = sphi 0, %s25
      %s28 = sphi 0, %s26
      %s29 = sphi 0, %s27
      %s30 = sphi 0, %s28
      %s42 = sphi 0, %s44
      %s45 = sphi 0, %s42
      %s46 = sphi 0, %s45
      %s62 = sphi 0, %s46
      %s68 = sphi 0, %s70
      %s71 = sphi 0, %s68
      %s72 = sphi 0, %s71
      %s88 = sphi 0, %s72
      %s92 = sphi 0, %s92
      %s94 = sphi 0, %s92
      %s95 = sphi 0, %s94
      %s109 = sphi 0, %s95
      %s115 = sphi 0, %s117
      %s118 = sphi 0, %s115
      %s119 = sphi 0, %s118
      %s135 = sphi 0, %s119
    $region4: #{tpu_custom_call.1} parent=1 // loop_header_branch
      %21 = sbr.rel (%p19) target = $region8
    $region5: #{tpu_custom_call.1} parent=1 // loop_body
      %s23 = ssub.s32 %s18, 1
      %s24 = ssub.s32 %s18, 2
      %s31 = sadd.s32 1, %s26
      %p32 = scmp.ge.s32.totalorder %s31, 2
      %s33 = scalar_select %p32, 0, %s31
      %s34 = sadd.s32 1, %s25
      %s35 = scalar_select %p32, %s34, %s25
      %p36 = scmp.ge.s32.totalorder %s35, 3
      %s37 = scalar_select %p36, 0, %s35
      %s38 = ssub.s32 %s25, %s37
      %s39 = ssub.s32 %s26, %s33
      %s40 = sor.u32 %s38, %s39
      %p41 = scmp.eq.s32.totalorder %s40, 0
      %s43 = sadd.s32 %s42, 1
      %s44 = scalar_select %p41, %s42, %s43
      %p47 = pneg %p41
      %p48 = scmp.eq.s32.totalorder %s18, 5
      %p49 = por %p47, %p48
      %p50 = scmp.ne.s32.totalorder %s42, %s45
      %p51 = scmp.eq.s32.totalorder %s18, 0
      %p52 = por %p50, %p51
      %p53 = scmp.ne.s32.totalorder %s42, %s45
      %p54 = scmp.eq.s32.totalorder %s23, 5
      %p55 = por %p53, %p54
      %p56 = scmp.ne.s32.totalorder %s45, %s46
      %p57 = scmp.eq.s32.totalorder %s23, 0
      %p58 = por %p56, %p57
      %p59 = scmp.ne.s32.totalorder %s45, %s46
      %p60 = scmp.eq.s32.totalorder %s24, 5
      %p61 = por %p59, %p60
      %p63 = scmp.ne.s32.totalorder %s46, %s62
      %p64 = scmp.eq.s32.totalorder %s24, 0
      %p65 = por %p63, %p64
      %s66 = ssub.s32 %s26, %s33
      %p67 = scmp.eq.s32.totalorder %s66, 0
      %s69 = sadd.s32 %s68, 1
      %s70 = scalar_select %p67, %s68, %s69
      %p73 = pneg %p67
      %p74 = scmp.eq.s32.totalorder %s18, 5
      %p75 = por %p73, %p74
      %p76 = scmp.ne.s32.totalorder %s68, %s71
      %p77 = scmp.eq.s32.totalorder %s18, 0
      %p78 = por %p76, %p77
      %p79 = scmp.ne.s32.totalorder %s68, %s71
      %p80 = scmp.eq.s32.totalorder %s23, 5
      %p81 = por %p79, %p80
      %p82 = scmp.ne.s32.totalorder %s71, %s72
      %p83 = scmp.eq.s32.totalorder %s23, 0
      %p84 = por %p82, %p83
      %p85 = scmp.ne.s32.totalorder %s71, %s72
      %p86 = scmp.eq.s32.totalorder %s24, 5
      %p87 = por %p85, %p86
      %p89 = scmp.ne.s32.totalorder %s72, %s88
      %p90 = scmp.eq.s32.totalorder %s24, 0
      %p91 = por %p89, %p90
      %s93 = sadd.s32 %s92, 1
      %p96 = scmp.eq.s32.totalorder %s18, 5
      %p97 = scmp.ne.s32.totalorder %s92, %s94
      %p98 = scmp.eq.s32.totalorder %s18, 0
      %p99 = por %p97, %p98
      %p100 = scmp.ne.s32.totalorder %s92, %s94
      %p101 = scmp.eq.s32.totalorder %s23, 5
      %p102 = por %p100, %p101
      %p103 = scmp.ne.s32.totalorder %s94, %s95
      %p104 = scmp.eq.s32.totalorder %s23, 0
      %p105 = por %p103, %p104
      %p106 = scmp.ne.s32.totalorder %s94, %s95
      %p107 = scmp.eq.s32.totalorder %s24, 5
      %p108 = por %p106, %p107
      %p110 = scmp.ne.s32.totalorder %s95, %s109
      %p111 = scmp.eq.s32.totalorder %s24, 0
      %p112 = por %p110, %p111
      %s113 = ssub.s32 %s25, %s37
      %p114 = scmp.eq.s32.totalorder %s113, 0
      %s116 = sadd.s32 %s115, 1
      %s117 = scalar_select %p114, %s115, %s116
      %p120 = pneg %p114
      %p121 = scmp.eq.s32.totalorder %s18, 5
      %p122 = por %p120, %p121
      %p123 = scmp.ne.s32.totalorder %s115, %s118
      %p124 = scmp.eq.s32.totalorder %s18, 0
      %p125 = por %p123, %p124
      %p126 = scmp.ne.s32.totalorder %s115, %s118
      %p127 = scmp.eq.s32.totalorder %s23, 5
      %p128 = por %p126, %p127
      %p129 = scmp.ne.s32.totalorder %s118, %s119
      %p130 = scmp.eq.s32.totalorder %s23, 0
      %p131 = por %p129, %p130
      %p132 = scmp.ne.s32.totalorder %s118, %s119
      %p133 = scmp.eq.s32.totalorder %s24, 5
      %p134 = por %p132, %p133
      %p136 = scmp.ne.s32.totalorder %s119, %s135
      %p137 = scmp.eq.s32.totalorder %s24, 0
      %p138 = por %p136, %p137
      %p139 = scmp.le.s32.totalorder 1, %s18
      %p140 = scmp.lt.s32.totalorder %s18, 7
      %p141 = pnand %p139, %p140
      %p142 = pneg %p141
      // Predicated region
      $region9: #{tpu_custom_call.1} parent=5 // pred_check
        _
      $region10: #{tpu_custom_call.1} parent=5 // pred_check_branch
        %144 = sbr.rel (%p141) target = $region12
      $region11: #{tpu_custom_call.1} parent=5 // pred_region
        %s145 = ssub.s32 %s18, 1
        // Predicated region
        $region13: #{tpu_custom_call.1} parent=11 // pred_check
          %p146 = pneg %p105
        $region14: #{tpu_custom_call.1} parent=11 // pred_check_branch
          %148 = sbr.rel (%p146) target = $region16
        $region15: #{tpu_custom_call.1} parent=11 // pred_region
          %150 = vsyncadd [#allocation7], 0
          %s152 = sshll.u32 %s2, 4
          %s153 = int_to_ptr.hbm [resolvable:$true] %s152
          %s154 = sshll.u32 [#allocation8], 4
          %s155 = int_to_ptr.vmem [resolvable:$true] %s154
          %157 = dma.hbm_to_vmem [thread:$0]  %s153, 32, %s155, [#allocation7]
        $region16: #{tpu_custom_call.1} parent=11 // pred_fallthru
          _
      $region12: #{tpu_custom_call.1} parent=5 // pred_fallthru
        _
      %p158 = scmp.lt.s32.totalorder %s18, 6
      // Predicated region
      $region17: #{tpu_custom_call.1} parent=5 // pred_check
        %p159 = pneg %p158
      $region18: #{tpu_custom_call.1} parent=5 // pred_check_branch
        %161 = sbr.rel (%p159) target = $region20
      $region19: #{tpu_custom_call.1} parent=5 // pred_region
        // Predicated region
        $region21: #{tpu_custom_call.1} parent=19 // pred_check
          %p162 = pneg %p52
        $region22: #{tpu_custom_call.1} parent=19 // pred_check_branch
          %164 = sbr.rel (%p162) target = $region24
        $region23: #{tpu_custom_call.1} parent=19 // pred_region
          %s165 = sand.u32 %s42, 1
          %s166 = scalar_lea.sflag [#allocation4], %s165
          %s167 = sand.u32 %s42, 1
          %s168 = smul.addr %s167, 8
          %s169 = scalar_lea.vmem [#allocation3], %s168
          %s170 = smul.u32 2, %s25
          %172 = vsyncadd %s166, 0
          %s173 = smul.addr %s170, 2
          %s174 = sadd.s32 %s26, %s173
          %s175 = smul.addr %s174, 4
          %s176 = scalar_lea.hbm %s0, %s175
          %s177 = sshll.u32 %s176, 4
          %s178 = int_to_ptr.hbm [resolvable:$true] %s177
          %s179 = sshll.u32 %s169, 4
          %s180 = int_to_ptr.vmem [resolvable:$true] %s179
          %185 = dma.hbm_to_vmem [thread:$0]  %s178, 128, %s180, %s166, 128, 64, 4
        $region24: #{tpu_custom_call.1} parent=19 // pred_fallthru
          _
        // Predicated region
        $region25: #{tpu_custom_call.1} parent=19 // pred_check
          %p186 = pneg %p78
        $region26: #{tpu_custom_call.1} parent=19 // pred_check_branch
          %188 = sbr.rel (%p186) target = $region28
        $region27: #{tpu_custom_call.1} parent=19 // pred_region
          %s189 = sand.u32 %s18, 1
          %s190 = scalar_lea.sflag [#allocation7], %s189
          %s191 = sand.u32 %s68, 1
          %s192 = smul.addr %s191, 128
          %s193 = scalar_lea.vmem [#allocation6], %s192
          %s194 = smul.u32 16, %s26
          %196 = vsyncadd %s190, 0
          %s197 = smul.addr %s194, 2
          %s198 = smul.addr %s197, 4
          %s199 = scalar_lea.hbm %s1, %s198
          %s200 = sshll.u32 %s199, 4
          %s201 = int_to_ptr.hbm [resolvable:$true] %s200
          %s202 = sshll.u32 %s193, 4
          %s203 = int_to_ptr.vmem [resolvable:$true] %s202
          %208 = dma.hbm_to_vmem [thread:$0]  %s201, 2048, %s203, %s190, 128, 128, 8
        $region28: #{tpu_custom_call.1} parent=19 // pred_fallthru
          _
      $region20: #{tpu_custom_call.1} parent=5 // pred_fallthru
        _
      %p209 = scmp.le.s32.totalorder 1, %s18
      %p210 = scmp.lt.s32.totalorder %s18, 7
      %p211 = pnand %p209, %p210
      %p212 = pneg %p211
      // Predicated region
      $region29: #{tpu_custom_call.1} parent=5 // pred_check
        _
      $region30: #{tpu_custom_call.1} parent=5 // pred_check_branch
        %214 = sbr.rel (%p211) target = $region32
      $region31: #{tpu_custom_call.1} parent=5 // pred_region
        %s215 = ssub.s32 %s18, 1
        %s216 = sand.u32 %s45, 1
        %s217 = scalar_lea.sflag [#allocation4], %s216
        %s218 = sand.u32 %s45, 1
        %s219 = smul.addr %s218, 8
        %s220 = scalar_lea.vmem [#allocation3], %s219
        // Predicated region
        $region33: #{tpu_custom_call.1} parent=31 // pred_check
          %p221 = pneg %p58
        $region34: #{tpu_custom_call.1} parent=31 // pred_check_branch
          %223 = sbr.rel (%p221) target = $region36
        $region35: #{tpu_custom_call.1} parent=31 // pred_region
          %225 = dma.done %s217, 128
        $region36: #{tpu_custom_call.1} parent=31 // pred_fallthru
          _
        %s226 = sand.u32 %s23, 1
        %s227 = scalar_lea.sflag [#allocation7], %s226
        %s228 = sand.u32 %s71, 1
        %s229 = smul.addr %s228, 128
        %s230 = scalar_lea.vmem [#allocation6], %s229
        // Predicated region
        $region37: #{tpu_custom_call.1} parent=31 // pred_check
          %p231 = pneg %p84
        $region38: #{tpu_custom_call.1} parent=31 // pred_check_branch
          %233 = sbr.rel (%p231) target = $region40
        $region39: #{tpu_custom_call.1} parent=31 // pred_region
          %235 = dma.done %s227, 2048
        $region40: #{tpu_custom_call.1} parent=31 // pred_fallthru
          _
        // Predicated region
        $region41: #{tpu_custom_call.1} parent=31 // pred_check
          %p236 = pneg %p105
        $region42: #{tpu_custom_call.1} parent=31 // pred_check_branch
          %238 = sbr.rel (%p236) target = $region44
        $region43: #{tpu_custom_call.1} parent=31 // pred_region
          %240 = dma.done [#allocation7], 32
        $region44: #{tpu_custom_call.1} parent=31 // pred_fallthru
          _
        %s241 = sand.u32 %s45, 1
        %s242 = scalar_lea.sflag [#allocation4], %s241
        %s243 = sand.u32 %s45, 1
        %s244 = smul.addr %s243, 8
        %s245 = scalar_lea.vmem [#allocation3], %s244
        %p246 = pneg %p58
        %p247 = pneg %p55
        %s248 = sand.u32 %s23, 1
        %s249 = scalar_lea.sflag [#allocation7], %s248
        %s250 = sand.u32 %s71, 1
        %s251 = smul.addr %s250, 128
        %s252 = scalar_lea.vmem [#allocation6], %s251
        %p253 = pneg %p84
        %p254 = pneg %p81
        %p255 = pneg %p105
        %p256 = pneg %p102
        %p257 = pneg %p131
        %p258 = pneg %p128
        %s259 = sand.u32 %s118, 1
        %s260 = scalar_lea.sflag [#allocation5], %s259
        %s261 = sand.u32 %s118, 1
        %s262 = smul.addr %s261, 32
        %s263 = scalar_lea.vmem [#allocation9], %s262
        %s264 = smul.u32 2, %s27
        %s265 = smul.u32 16, %s28
        %s266 = smul.u32 2, %s27
        %p267 = scmp.eq.s32.totalorder %s28, 0
        // Predicated region
        $region45: #{tpu_custom_call.1} parent=31 // pred_check
          %p268 = pneg %p267
        $region46: #{tpu_custom_call.1} parent=31 // pred_check_branch
          %270 = sbr.rel (%p268) target = $region48
        $region47: #{tpu_custom_call.1} parent=31 // pred_region
          %271 = vst [vmem:[#allocation2] sm:$0xff] 0.0
          %272 = vst [vmem:[#allocation2 + $0x8] sm:$0xff] 0.0
          %273 = vst [vmem:[#allocation2 + $0x10] sm:$0xff] 0.0
          %274 = vst [vmem:[#allocation2 + $0x18] sm:$0xff] 0.0
        $region48: #{tpu_custom_call.1} parent=31 // pred_fallthru
          _
        %v275 = vld [vmem:[#allocation2] sm:$0xff]
        %v276 = vld [vmem:[#allocation2 + $0x8] sm:$0xff]
        %v277 = vld [vmem:[#allocation2 + $0x10] sm:$0xff]
        %v278 = vld [vmem:[#allocation2 + $0x18] sm:$0xff]
        %v279 = vld [vmem:[%s220] sm:$0xf]
        %v280 = vld [vmem:[%s220 + $0x4] sm:$0xf]
        %v281 = vld [vmem:[%s230] sm:$0xff]
        %v282 = vld [vmem:[%s230 + $0x8] sm:$0xff]
        %v283 = vld [vmem:[%s230 + $0x10] sm:$0xff]
        %v284 = vld [vmem:[%s230 + $0x18] sm:$0xff]
        %v285 = vld [vmem:[%s230 + $0x20] sm:$0xff]
        %v286 = vld [vmem:[%s230 + $0x28] sm:$0xff]
        %v287 = vld [vmem:[%s230 + $0x30] sm:$0xff]
        %v288 = vld [vmem:[%s230 + $0x38] sm:$0xff]
        %v289 = vld [vmem:[%s230 + $0x40] sm:$0xff]
        %v290 = vld [vmem:[%s230 + $0x48] sm:$0xff]
        %v291 = vld [vmem:[%s230 + $0x50] sm:$0xff]
        %v292 = vld [vmem:[%s230 + $0x58] sm:$0xff]
        %v293 = vld [vmem:[%s230 + $0x60] sm:$0xff]
        %v294 = vld [vmem:[%s230 + $0x68] sm:$0xff]
        %v295 = vld [vmem:[%s230 + $0x70] sm:$0xff]
        %v296 = vld [vmem:[%s230 + $0x78] sm:$0xff]
        %v299 = vunpack.c.l.b16 %v279
        %v300 = vunpack.c.l.b16 %v280
        %v301 = vpack.c.b16 %v300, %v299
        %v319 = vunpack.c.l.b16 %v281
        %v320 = vunpack.c.h.b16 %v281
        %v321 = vunpack.c.l.b16 %v282
        %v322 = vunpack.c.h.b16 %v282
        %v323 = vunpack.c.l.b16 %v283
        %v324 = vunpack.c.h.b16 %v283
        %v325 = vunpack.c.l.b16 %v284
        %v326 = vunpack.c.h.b16 %v284
        %v327 = vunpack.c.l.b16 %v285
        %v328 = vunpack.c.h.b16 %v285
        %v329 = vunpack.c.l.b16 %v286
        %v330 = vunpack.c.h.b16 %v286
        %v331 = vunpack.c.l.b16 %v287
        %v332 = vunpack.c.h.b16 %v287
        %v333 = vunpack.c.l.b16 %v288
        %v334 = vunpack.c.h.b16 %v288
        %v335 = vunpack.c.l.b16 %v289
        %v336 = vunpack.c.h.b16 %v289
        %v337 = vunpack.c.l.b16 %v290
        %v338 = vunpack.c.h.b16 %v290
        %v339 = vunpack.c.l.b16 %v291
        %v340 = vunpack.c.h.b16 %v291
        %v341 = vunpack.c.l.b16 %v292
        %v342 = vunpack.c.h.b16 %v292
        %v343 = vunpack.c.l.b16 %v293
        %v344 = vunpack.c.h.b16 %v293
        %v345 = vunpack.c.l.b16 %v294
        %v346 = vunpack.c.h.b16 %v294
        %v347 = vunpack.c.l.b16 %v295
        %v348 = vunpack.c.h.b16 %v295
        %v349 = vunpack.c.l.b16 %v296
        %v350 = vunpack.c.h.b16 %v296
        %v351 = vpack.c.b16 %v321, %v319
        %v352 = vpack.c.b16 %v322, %v320
        %v353 = vpack.c.b16 %v325, %v323
        %v354 = vpack.c.b16 %v326, %v324
        %v355 = vpack.c.b16 %v329, %v327
        %v356 = vpack.c.b16 %v330, %v328
        %v357 = vpack.c.b16 %v333, %v331
        %v358 = vpack.c.b16 %v334, %v332
        %v359 = vpack.c.b16 %v337, %v335
        %v360 = vpack.c.b16 %v338, %v336
        %v361 = vpack.c.b16 %v341, %v339
        %v362 = vpack.c.b16 %v342, %v340
        %v363 = vpack.c.b16 %v345, %v343
        %v364 = vpack.c.b16 %v346, %v344
        %v365 = vpack.c.b16 %v349, %v347
        %v366 = vpack.c.b16 %v350, %v348
        %383 = vmatpush.bf16.msra.mxu0 %v365
        %384 = vmatpush.bf16.msra.mxu0 %v363
        %385 = vmatpush.bf16.msra.mxu0 %v361
        %386 = vmatpush.bf16.msra.mxu0 %v359
        %387 = vmatpush.bf16.msra.mxu0 %v357
        %388 = vmatpush.bf16.msra.mxu0 %v355
        %389 = vmatpush.bf16.msra.mxu0 %v353
        %390 = vmatpush.bf16.msra.mxu0 %v351
        %391 = vmatmul.bf16.gmra.mxu0 %v301
        %v392 = vpop.f32.mrf.mxu0
        %v393 = vadd.f32 0.0, %v392
        %v394 = vpop.f32.mrf.mxu0
        %v395 = vadd.f32 0.0, %v394
        %396 = vdwg.mxu0
        %397 = vmatpush.bf16.msra.mxu0 %v366
        %398 = vmatpush.bf16.msra.mxu0 %v364
        %399 = vmatpush.bf16.msra.mxu0 %v362
        %400 = vmatpush.bf16.msra.mxu0 %v360
        %401 = vmatpush.bf16.msra.mxu0 %v358
        %402 = vmatpush.bf16.msra.mxu0 %v356
        %403 = vmatpush.bf16.msra.mxu0 %v354
        %404 = vmatpush.bf16.msra.mxu0 %v352
        %405 = vmatmul.bf16.gmra.mxu0 %v301
        %v406 = vpop.f32.mrf.mxu0
        %v407 = vadd.f32 0.0, %v406
        %v408 = vpop.f32.mrf.mxu0
        %v409 = vadd.f32 0.0, %v408
        %410 = vdwg.mxu0
        %v411 = vadd.f32 %v275, %v393
        %v412 = vadd.f32 %v276, %v407
        %v413 = vadd.f32 %v277, %v395
        %v414 = vadd.f32 %v278, %v409
        %415 = vst [vmem:[#allocation2] sm:$0xff] %v411
        %416 = vst [vmem:[#allocation2 + $0x8] sm:$0xff] %v412
        %417 = vst [vmem:[#allocation2 + $0x10] sm:$0xff] %v413
        %418 = vst [vmem:[#allocation2 + $0x18] sm:$0xff] %v414
        %p419 = scmp.eq.s32.totalorder %s28, 1
        // Predicated region
        $region49: #{tpu_custom_call.1} parent=31 // pred_check
          %p420 = pneg %p419
        $region50: #{tpu_custom_call.1} parent=31 // pred_check_branch
          %422 = sbr.rel (%p420) target = $region52
        $region51: #{tpu_custom_call.1} parent=31 // pred_region
          %v423 = vld [vmem:[#allocation2] sm:$0xff]
          %v424 = vld [vmem:[#allocation2 + $0x8] sm:$0xff]
          %v425 = vld [vmem:[#allocation2 + $0x10] sm:$0xff]
          %v426 = vld [vmem:[#allocation2 + $0x18] sm:$0xff]
          %v427 = vld [vmem:[#allocation8] sm:$0x3]
          %v429 = vperm.slane %v427, 0
          %v430 = vperm.slane %v427, 1
          %v433 = vadd.f32 %v423, %v429
          %v434 = vadd.f32 %v424, %v430
          %v435 = vadd.f32 %v425, %v429
          %v436 = vadd.f32 %v426, %v430
          %v437 = vmul.f32 %v433, %v433
          %v438 = vmul.f32 %v434, %v434
          %v439 = vmul.f32 %v435, %v435
          %v440 = vmul.f32 %v436, %v436
          %v441 = vadd.f32 %v437, %v438
          %442 = vadd.xlane.f32.xlu0 %v441
          %v443 = vpop.xlane.xlu0 %442
          %v444 = vadd.f32 %v439, %v440
          %445 = vadd.xlane.f32.xlu0 %v444
          %v446 = vpop.xlane.xlu0 %445
          %v447 = vmax.f32 %v443, 1e-24
          %v448 = vmax.f32 %v446, 1e-24
          %v449 = vrsqrt.pop %v447
          %v450 = vmul.f32 %v449, %v447
          %v451 = vmul.f32 %v450, %v449
          %v452 = vmul.f32 0.5, %v451
          %v453 = vsub.f32 1.5, %v452
          %v454 = vmul.f32 %v449, %v453
          %vm455 = vweird.f32 %v447
          %vm456 = vweird.f32 %v449
          %vm457 = vmor %vm455, %vm456
          %v458 = vsel %vm457, %v449, %v454
          %v459 = vrsqrt.pop %v448
          %v460 = vmul.f32 %v459, %v448
          %v461 = vmul.f32 %v460, %v459
          %v462 = vmul.f32 0.5, %v461
          %v463 = vsub.f32 1.5, %v462
          %v464 = vmul.f32 %v459, %v463
          %vm465 = vweird.f32 %v448
          %vm466 = vweird.f32 %v459
          %vm467 = vmor %vm465, %vm466
          %v468 = vsel %vm467, %v459, %v464
          %v469 = vmul.f32 %v433, %v458
          %v470 = vmul.f32 %v434, %v458
          %v471 = vmul.f32 %v435, %v468
          %v472 = vmul.f32 %v436, %v468
          %473 = vst [vmem:[%s263] sm:$0xff] %v469
          %474 = vst [vmem:[%s263 + $0x8] sm:$0xff] %v470
          %475 = vst [vmem:[%s263 + $0x10] sm:$0xff] %v471
          %476 = vst [vmem:[%s263 + $0x18] sm:$0xff] %v472
        $region52: #{tpu_custom_call.1} parent=31 // pred_fallthru
          _
        %s477 = sand.u32 %s118, 1
        %s478 = scalar_lea.sflag [#allocation5], %s477
        %s479 = sand.u32 %s118, 1
        %s480 = smul.addr %s479, 32
        %s481 = scalar_lea.vmem [#allocation9], %s480
        // Predicated region
        $region53: #{tpu_custom_call.1} parent=31 // pred_check
          %p482 = pneg %p128
        $region54: #{tpu_custom_call.1} parent=31 // pred_check_branch
          %484 = sbr.rel (%p482) target = $region56
        $region55: #{tpu_custom_call.1} parent=31 // pred_region
          %s485 = smul.u32 2, %s27
          %487 = vsyncadd %s478, 0
          %s488 = smul.addr %s485, 2
          %s489 = smul.addr %s488, 8
          %s490 = scalar_lea.hbm %s3, %s489
          %s491 = sshll.u32 %s481, 4
          %s492 = int_to_ptr.vmem [resolvable:$true] %s491
          %s493 = sshll.u32 %s490, 4
          %s494 = int_to_ptr.hbm [resolvable:$true] %s493
          %499 = dma.vmem_to_hbm [thread:$0]  %s492, 512, %s494, %s478, 256, 256, 16
        $region56: #{tpu_custom_call.1} parent=31 // pred_fallthru
          _
      $region32: #{tpu_custom_call.1} parent=5 // pred_fallthru
        _
      %p500 = scmp.le.s32.totalorder 2, %s18
      // Predicated region
      $region57: #{tpu_custom_call.1} parent=5 // pred_check
        %p501 = pneg %p500
      $region58: #{tpu_custom_call.1} parent=5 // pred_check_branch
        %503 = sbr.rel (%p501) target = $region60
      $region59: #{tpu_custom_call.1} parent=5 // pred_region
        %s504 = ssub.s32 %s18, 2
        // Predicated region
        $region61: #{tpu_custom_call.1} parent=59 // pred_check
          %p505 = pneg %p134
        $region62: #{tpu_custom_call.1} parent=59 // pred_check_branch
          %507 = sbr.rel (%p505) target = $region64
        $region63: #{tpu_custom_call.1} parent=59 // pred_region
          %s508 = sand.u32 %s119, 1
          %s509 = scalar_lea.sflag [#allocation5], %s508
          %s510 = sand.u32 %s119, 1
          %s511 = smul.addr %s510, 32
          %s512 = scalar_lea.vmem [#allocation9], %s511
          %514 = dma.done %s509, 512
        $region64: #{tpu_custom_call.1} parent=59 // pred_fallthru
          _
      $region60: #{tpu_custom_call.1} parent=5 // pred_fallthru
        _
    $region6: #{tpu_custom_call.1} parent=1 // loop_footer
      %s22 = sadd.s32 1, %s18
    $region7: #{tpu_custom_call.1} parent=1 // loop_footer_branch
      %17 = sbr.rel target = $region3
    $region8: #{tpu_custom_call.1} parent=1 // loop_exit
      _
    %515 = vsyncpa [#allocation4], 1
    %s516 = scalar_lea.sflag [#allocation4], 1
    %517 = vsyncpa %s516, 1
    %518 = vsyncpa [#allocation7], 1
    %s519 = scalar_lea.sflag [#allocation7], 1
    %520 = vsyncpa %s519, 1
    %521 = vsyncpa [#allocation5], 1
    %s522 = scalar_lea.sflag [#allocation5], 1
    %523 = vsyncpa %s522, 1

</llo_original>
